<compile_context>
chip_gen: v5e
topology: v5e:2x2
jax: 0.10.0
libtpu: 0.0.40
codegen_flags: <defaults>
</compile_context>

<pallas_src>
import jax
import jax.numpy as jnp
from jax.experimental import pallas as pl
from jax.experimental.pallas import tpu as pltpu


def linear_kernel(x_ref, w_ref, b_ref, o_ref):
    """x_ref: (B, IN) f32 VMEM; w_ref: (OUT=1, IN) f32 VMEM; b_ref: (1, 1) f32 SMEM;
    o_ref: (B, OUT=1) f32 VMEM."""
    x = x_ref[...]                                   # (B, IN)  single VMEM load
    w = w_ref[...]                                   # (1, IN)  lane-dense weight row
    # OUT == 1: y[i] = sum_k x[i, k] * w[0, k] + bias
    # VPU broadcast-multiply + XLU lane reduce over the logical (B, IN) view;
    # MXU deliberately not used at this shape.
    acc = jnp.sum(x * w, axis=-1, keepdims=True)     # (B, 1) f32
    o_ref[...] = (acc + b_ref[0, 0]).astype(o_ref.dtype)


def simple_model_forward(x, weight, bias):
    """Forward of SimpleModel.

    x: (B, 10) f32; weight: (1, 10) f32 (native PyTorch nn.Linear layout);
    bias: (1,) f32.  Returns {'output': (B, 1) f32}.
    """
    B, _ = x.shape
    OUT = weight.shape[0]
    bias_2d = bias.reshape(OUT, OUT)  # (1, 1) scalar carrier for SMEM; metadata-only reshape

    out = pl.pallas_call(
        linear_kernel,
        out_shape=jax.ShapeDtypeStruct((B, OUT), x.dtype),
        in_specs=[
            pl.BlockSpec(memory_space=pltpu.MemorySpace.VMEM),  # x (whole array)
            pl.BlockSpec(memory_space=pltpu.MemorySpace.VMEM),  # weight (1, IN)
            pl.BlockSpec(memory_space=pltpu.MemorySpace.SMEM),  # bias scalar (1, 1)
        ],
        out_specs=pl.BlockSpec(memory_space=pltpu.MemorySpace.VMEM),
    )(x, weight, bias_2d)
    return {"output": out}


if __name__ == "__main__":
    key = jax.random.PRNGKey(0)
    k_x, k_w, k_b = jax.random.split(key, 3)

    B, IN, OUT = 8, 10, 1

    # Deterministic parameter init mimicking nn.Linear: U(-1/sqrt(IN), 1/sqrt(IN))
    bound = 1.0 / jnp.sqrt(jnp.float32(IN))
    weight = jax.random.uniform(k_w, (OUT, IN), jnp.float32, -bound, bound)
    bias = jax.random.uniform(k_b, (OUT,), jnp.float32, -bound, bound)

    x = jax.random.normal(k_x, (B, IN), jnp.float32)

    outputs = simple_model_forward(x, weight, bias)
    out = jax.block_until_ready(outputs["output"])

    # Sanity check against plain-JAX reference of the same linear layer.
    ref = x @ weight.T + bias
    assert out.shape == (B, OUT)
    assert jnp.allclose(out, ref, atol=1e-5, rtol=1e-5)

    print("KERNEL_OK")
</pallas_src>

<mosaic_0001>
module attributes {stable_mosaic.version = 11 : i64} {
  func.func @linear_kernel(%arg0: memref<8x10xf32, #tpu.memory_space<vmem>>, %arg1: memref<1x10xf32, #tpu.memory_space<vmem>>, %arg2: memref<1x1xf32, #tpu.memory_space<smem>>, %arg3: memref<8x1xf32, #tpu.memory_space<vmem>>) attributes {dimension_semantics = [], scalar_prefetch = 0 : i64, scratch_operands = 0 : i64, tpu.core_type = #tpu.core_type<tc>} {
    %c0 = arith.constant 0 : index
    %c0_0 = arith.constant 0 : index
    %0 = vector.load %arg0[%c0, %c0_0] : memref<8x10xf32, #tpu.memory_space<vmem>>, vector<8x10xf32>
    %c0_1 = arith.constant 0 : index
    %c0_2 = arith.constant 0 : index
    %1 = vector.load %arg1[%c0_1, %c0_2] : memref<1x10xf32, #tpu.memory_space<vmem>>, vector<1x10xf32>
    %2 = vector.broadcast %1 : vector<1x10xf32> to vector<8x10xf32>
    %3 = arith.mulf %0, %2 : vector<8x10xf32>
    %cst = arith.constant dense<0.000000e+00> : vector<8xf32>
    %4 = vector.multi_reduction <add>, %3, %cst [1] : vector<8x10xf32> to vector<8xf32>
    %5 = vector.shape_cast %4 : vector<8xf32> to vector<8x1xf32>
    %c0_3 = arith.constant 0 : index
    %c0_4 = arith.constant 0 : index
    %6 = memref.load %arg2[%c0_3, %c0_4] : memref<1x1xf32, #tpu.memory_space<smem>>
    %7 = vector.broadcast %6 : f32 to vector<8x1xf32>
    %8 = arith.addf %5, %7 : vector<8x1xf32>
    %c0_5 = arith.constant 0 : index
    %c0_6 = arith.constant 0 : index
    %9 = vector.load %arg3[%c0_5, %c0_6] : memref<8x1xf32, #tpu.memory_space<vmem>>, vector<8x1xf32>
    tpu.vector_store %arg3[%c0_5, %c0_6], %8 {strides = array<i32>} : memref<8x1xf32, #tpu.memory_space<vmem>>, vector<8x1xf32>,
    return
  }
}

</mosaic_0001>

<llo_original>
// kernel: tpu_custom_call.1
$region0: #{tpu_custom_call.1}
  #allocation0 [shape = 'u32[]', space=smem, size = 0x4, offset = 0x4, fixed_abs, tag = 'smem constant byte address 0x4 - core index']
  #allocation1 [shape = 'u32[72,128]{1,0:T(1,128)}', space=vmem, size = 0x9000, scoped, tag = 'internal scratch']
  #allocation2 [shape = 'f32[1,1]{1,0:T(1,128)S(6)}', space=smem, size = 0x200, scoped, tag = 'scoped memory for tpu_custom_call.1']
  %s0 = inlined_call_operand.hbm [shape: f32[8,10], index: 0, kind: input, shape index: {}]
  %s1 = inlined_call_operand.vmem [shape: f32[1,10], index: 1, kind: input, shape index: {}]
  %s2 = inlined_call_operand.<no memory space> [shape: f32[1,1], index: 2, kind: input, shape index: {}]
  %s3 = inlined_call_operand.vmem [shape: f32[8,1], index: 3, kind: output, shape index: {}]
  %s4 = sld [smem:[#allocation0]]
  $region26: #{tpu_custom_call.1} parent=0
    _
  %s6 = ssub.s32 1, %s4
  %s7 = scalar_select 0, %s6, %s4
  %8 = sst [smem:[#allocation2]] %s2
  $region1: #{tpu_custom_call.1} parent=0
    #allocation3 [shape = 'u8[4096]{0}', space=vmem, size = 0x1000, scoped, tag = 'input window, operand 0, single buffered']
    #allocation4 [shape = 's32[1]{0}', space=sflag, size = 0x4, scoped, tag = 'scoped memory for tpu_custom_call.1']
    %9 = vsyncpa [#allocation4], 0
    // Predicated region
    $region2: #{tpu_custom_call.1} parent=1 // pred_check
      _
    $region3: #{tpu_custom_call.1} parent=1 // pred_check_branch
      %11 = sbr.rel (0) target = $region5
    $region4: #{tpu_custom_call.1} parent=1 // pred_region
      %13 = vsyncadd [#allocation4], 0
      %s15 = sshll.u32 %s0, 4
      %s16 = int_to_ptr.hbm [resolvable:$true] %s15
      %s17 = sshll.u32 [#allocation3], 4
      %s18 = int_to_ptr.vmem [resolvable:$true] %s17
      %20 = dma.hbm_to_vmem [thread:$0]  %s16, 128, %s18, [#allocation4]
    $region5: #{tpu_custom_call.1} parent=1 // pred_fallthru
      _
    // Predicated region
    $region6: #{tpu_custom_call.1} parent=1 // pred_check
      _
    $region7: #{tpu_custom_call.1} parent=1 // pred_check_branch
      %22 = sbr.rel (0) target = $region9
    $region8: #{tpu_custom_call.1} parent=1 // pred_region
      _
    $region9: #{tpu_custom_call.1} parent=1 // pred_fallthru
      _
    // Predicated region
    $region10: #{tpu_custom_call.1} parent=1 // pred_check
      _
    $region11: #{tpu_custom_call.1} parent=1 // pred_check_branch
      %24 = sbr.rel (0) target = $region13
    $region12: #{tpu_custom_call.1} parent=1 // pred_region
      _
    $region13: #{tpu_custom_call.1} parent=1 // pred_fallthru
      _
    // Predicated region
    $region14: #{tpu_custom_call.1} parent=1 // pred_check
      _
    $region15: #{tpu_custom_call.1} parent=1 // pred_check_branch
      %26 = sbr.rel (0) target = $region17
    $region16: #{tpu_custom_call.1} parent=1 // pred_region
      %28 = dma.done [#allocation4], 128
    $region17: #{tpu_custom_call.1} parent=1 // pred_fallthru
      _
    %v29 = vld [vmem:[#allocation3] sm:$0xff]
    %v30 = vld [vmem:[%s1] sm:$0x1]
    %v32 = vperm.slane %v30, 0
    %v34 = vmul.f32 %v29, %v32
    %vm35 = vcmask 80896
    %v36 = vsel %vm35, %v34, 0.0
    %37 = vadd.xlane.f32.xlu0 %v36
    %v38 = vpop.xlane.xlu0 %37
    %s39 = sld [smem:[#allocation2]]
    %v40 = vstv %s39
    %v41 = vadd.f32 %v38, %v40
    %vm42 = vcmask 7168
    %43 = vst.msk [vmem:[%s3] sm:$0xff] %vm42, %v41
    // Predicated region
    $region18: #{tpu_custom_call.1} parent=1 // pred_check
      _
    $region19: #{tpu_custom_call.1} parent=1 // pred_check_branch
      %45 = sbr.rel (0) target = $region21
    $region20: #{tpu_custom_call.1} parent=1 // pred_region
      _
    $region21: #{tpu_custom_call.1} parent=1 // pred_fallthru
      _
    // Predicated region
    $region22: #{tpu_custom_call.1} parent=1 // pred_check
      _
    $region23: #{tpu_custom_call.1} parent=1 // pred_check_branch
      %47 = sbr.rel (0) target = $region25
    $region24: #{tpu_custom_call.1} parent=1 // pred_region
      _
    $region25: #{tpu_custom_call.1} parent=1 // pred_fallthru
      _
    %48 = vsyncpa [#allocation4], 1

</llo_original>
